<compile_context>
chip_gen: v7x
topology: tpu7x:2x2x1
jax: 0.10.0
libtpu: 0.0.40
codegen_flags: <defaults>
</compile_context>

<pallas_src>
import jax
import jax.numpy as jnp
from jax.experimental import pallas as pl
from jax.experimental.pallas import tpu as pltpu


def _sigmoid(x):
    # Exact identity sigmoid(x) = 0.5*(1 + tanh(x/2)): a single EUP op.
    return 0.5 * jnp.tanh(0.5 * x) + 0.5


def add_with_carry_kernel(x_ref, y_ref, w1_ref, b1_ref, w2_ref, b2_ref, out_ref):
    # ---- hoisted, loop-invariant loads -------------------------------------
    w1x = w1_ref[0:1, :]          # (1, H) fc1 weight row for the x bit
    w1y = w1_ref[1:2, :]          # (1, H) fc1 weight row for the y bit
    w1c = w1_ref[2:3, :]          # (1, H) fc1 weight row for the carry
    b1 = b1_ref[...]              # (1, H)
    w2s = w2_ref[0:1, :]          # (1, H) sum head
    w2c = w2_ref[1:2, :]          # (1, H) carry head
    b2s = b2_ref[0]               # scalar (SMEM)
    b2c = b2_ref[1]               # scalar (SMEM)

    n_bits = out_ref.shape[1]

    # ---- prologue: carry-independent terms, OFF the serial carry chain -----
    # t[i] = x_i*w1x + y_i*w1y + b1   (SMEM scalar reads + splat FMAs)
    t = [x_ref[i] * w1x + y_ref[i] * w1y + b1 for i in range(n_bits)]

    # Traced column-index iota (replaces the previously captured numpy masks).
    col = jax.lax.broadcasted_iota(jnp.int32, (1, n_bits), 1)

    out_logits = jnp.zeros((1, n_bits), jnp.float32)
    carry = jnp.zeros((1, 1), jnp.float32)            # vreg-resident carry

    # ---- fully unrolled ripple-carry: LSB (last col) -> MSB (first col) ----
    # Per-bit carry-dependent chain: 1 FMA, 1 relu, 1 mul, 1 lane reduce,
    # 1 scalar add, 1 tanh.
    for step in range(n_bits):
        i = n_bits - 1 - step

        h = jnp.maximum(carry * w1c + t[i], 0.0)                      # (1, H)

        # Carry head: (1,H) row reduce -> next carry.
        logit_c = jnp.sum(h * w2c, axis=-1, keepdims=True) + b2c      # (1, 1)
        carry = _sigmoid(logit_c)

        # Sum head: pure sink off the carry chain, logit only.
        logit_s = jnp.sum(h * w2s, axis=-1, keepdims=True) + b2s      # (1, 1)
        out_logits = jnp.where(col == i, logit_s, out_logits)

    # One vectorized sigmoid over all sum bits, single store.
    out_ref[...] = _sigmoid(out_logits).astype(out_ref.dtype)


def add_with_carry(x, y, w1, b1, w2, b2):
    """x, y: (1, num_bits).  w1: (3,H), b1: (1,H) or (H,), w2: (2,H), b2: (1,2) or (2,).

    Returns (1, num_bits) float32 (sum-bit probabilities).
    """
    assert x.shape[0] == 1 and y.shape[0] == 1, (
        "AddWithCarryNetwork semantics require batch == 1 (the PyTorch loop "
        "stacks a scalar carry with x[:, i]).")
    n_bits = x.shape[1]
    hidden = w1.shape[1]

    x1 = jnp.reshape(x, (n_bits,)).astype(jnp.float32)      # 1-D SMEM (tiny)
    y1 = jnp.reshape(y, (n_bits,)).astype(jnp.float32)
    b1r = jnp.reshape(b1, (1, hidden)).astype(jnp.float32)
    b2r = jnp.reshape(b2, (2,)).astype(jnp.float32)          # 1-D SMEM scalars

    cost = pl.CostEstimate(
        flops=int(n_bits * 12 * hidden),
        transcendentals=int(2 * n_bits),
        bytes_accessed=int(4 * (2 * n_bits + 3 * hidden + hidden
                                + 2 * hidden + 2 + n_bits)),
    )

    return pl.pallas_call(
        add_with_carry_kernel,
        out_shape=jax.ShapeDtypeStruct((1, n_bits), jnp.float32),
        in_specs=[
            pl.BlockSpec(memory_space=pltpu.MemorySpace.SMEM),   # x  (scalar bit reads)
            pl.BlockSpec(memory_space=pltpu.MemorySpace.SMEM),   # y  (scalar bit reads)
            pl.BlockSpec(memory_space=pltpu.MemorySpace.VMEM),   # w1 (3, H)
            pl.BlockSpec(memory_space=pltpu.MemorySpace.VMEM),   # b1 (1, H)
            pl.BlockSpec(memory_space=pltpu.MemorySpace.VMEM),   # w2 (2, H)
            pl.BlockSpec(memory_space=pltpu.MemorySpace.SMEM),   # b2 (2,) scalars
        ],
        out_specs=pl.BlockSpec(memory_space=pltpu.MemorySpace.VMEM),
        cost_estimate=cost,
    )(x1, y1, w1.astype(jnp.float32), b1r, w2.astype(jnp.float32), b2r)


def _reference(x, y, w1, b1, w2, b2):
    """Pure-JAX emulation of the PyTorch loop, for a sanity check."""
    n_bits = x.shape[1]
    out = jnp.zeros((1, n_bits), jnp.float32)
    carry = jnp.float32(0.0)
    b1f = jnp.reshape(b1, (-1,))
    b2f = jnp.reshape(b2, (2,))
    for i in reversed(range(n_bits)):
        inp = jnp.array([x[0, i], y[0, i], carry], jnp.float32)   # (3,)
        h = jnp.maximum(inp @ w1 + b1f, 0.0)                      # (H,)
        o = jax.nn.sigmoid(h @ w2.T + b2f)                        # (2,)
        out = out.at[0, i].set(o[0])
        carry = o[1]
    return out


if __name__ == "__main__":
    key = jax.random.PRNGKey(0)
    k1, k2, k3, k4, k5, k6 = jax.random.split(key, 6)

    batch, n_bits, hidden = 1, 8, 16
    x = jax.random.bernoulli(k1, 0.5, (batch, n_bits)).astype(jnp.float32)
    y = jax.random.bernoulli(k2, 0.5, (batch, n_bits)).astype(jnp.float32)

    w1 = 0.5 * jax.random.normal(k3, (3, hidden), jnp.float32)       # fc1 weight^T
    b1 = 0.1 * jax.random.normal(k4, (1, hidden), jnp.float32)       # fc1 bias
    w2 = 0.5 * jax.random.normal(k5, (2, hidden), jnp.float32)       # fc2 weight (out,in)
    b2 = 0.1 * jax.random.normal(k6, (1, 2), jnp.float32)            # fc2 bias

    out = add_with_carry(x, y, w1, b1, w2, b2)
    jax.block_until_ready(out)

    ref = _reference(x, y, w1, b1, w2, b2)
    assert out.shape == (batch, n_bits)
    assert jnp.allclose(out, ref, atol=1e-5, rtol=1e-5), (out, ref)

    print("KERNEL_OK")
</pallas_src>

<mosaic_0001>
module attributes {stable_mosaic.version = 11 : i64} {
  func.func @add_with_carry_kernel(%arg0: memref<8xf32, #tpu.memory_space<smem>>, %arg1: memref<8xf32, #tpu.memory_space<smem>>, %arg2: memref<3x16xf32, #tpu.memory_space<vmem>>, %arg3: memref<1x16xf32, #tpu.memory_space<vmem>>, %arg4: memref<2x16xf32, #tpu.memory_space<vmem>>, %arg5: memref<2xf32, #tpu.memory_space<smem>>, %arg6: memref<1x8xf32, #tpu.memory_space<vmem>>) attributes {dimension_semantics = [], scalar_prefetch = 0 : i64, scratch_operands = 0 : i64, tpu.core_type = #tpu.core_type<tc>} {
    %c0 = arith.constant 0 : index
    %c0_0 = arith.constant 0 : index
    %0 = vector.load %arg2[%c0, %c0_0] : memref<3x16xf32, #tpu.memory_space<vmem>>, vector<1x16xf32>
    %c1 = arith.constant 1 : index
    %c0_1 = arith.constant 0 : index
    %1 = vector.load %arg2[%c1, %c0_1] : memref<3x16xf32, #tpu.memory_space<vmem>>, vector<1x16xf32>
    %c2 = arith.constant 2 : index
    %c0_2 = arith.constant 0 : index
    %2 = vector.load %arg2[%c2, %c0_2] : memref<3x16xf32, #tpu.memory_space<vmem>>, vector<1x16xf32>
    %c0_3 = arith.constant 0 : index
    %c0_4 = arith.constant 0 : index
    %3 = vector.load %arg3[%c0_3, %c0_4] : memref<1x16xf32, #tpu.memory_space<vmem>>, vector<1x16xf32>
    %c0_5 = arith.constant 0 : index
    %c0_6 = arith.constant 0 : index
    %4 = vector.load %arg4[%c0_5, %c0_6] : memref<2x16xf32, #tpu.memory_space<vmem>>, vector<1x16xf32>
    %c1_7 = arith.constant 1 : index
    %c0_8 = arith.constant 0 : index
    %5 = vector.load %arg4[%c1_7, %c0_8] : memref<2x16xf32, #tpu.memory_space<vmem>>, vector<1x16xf32>
    %c0_9 = arith.constant 0 : index
    %6 = memref.load %arg5[%c0_9] : memref<2xf32, #tpu.memory_space<smem>>
    %c1_10 = arith.constant 1 : index
    %7 = memref.load %arg5[%c1_10] : memref<2xf32, #tpu.memory_space<smem>>
    %c0_11 = arith.constant 0 : index
    %8 = memref.load %arg0[%c0_11] : memref<8xf32, #tpu.memory_space<smem>>
    %9 = vector.broadcast %8 : f32 to vector<1x16xf32>
    %10 = arith.mulf %9, %0 : vector<1x16xf32>
    %c0_12 = arith.constant 0 : index
    %11 = memref.load %arg1[%c0_12] : memref<8xf32, #tpu.memory_space<smem>>
    %12 = vector.broadcast %11 : f32 to vector<1x16xf32>
    %13 = arith.mulf %12, %1 : vector<1x16xf32>
    %14 = arith.addf %10, %13 : vector<1x16xf32>
    %15 = arith.addf %14, %3 : vector<1x16xf32>
    %c1_13 = arith.constant 1 : index
    %16 = memref.load %arg0[%c1_13] : memref<8xf32, #tpu.memory_space<smem>>
    %17 = vector.broadcast %16 : f32 to vector<1x16xf32>
    %18 = arith.mulf %17, %0 : vector<1x16xf32>
    %c1_14 = arith.constant 1 : index
    %19 = memref.load %arg1[%c1_14] : memref<8xf32, #tpu.memory_space<smem>>
    %20 = vector.broadcast %19 : f32 to vector<1x16xf32>
    %21 = arith.mulf %20, %1 : vector<1x16xf32>
    %22 = arith.addf %18, %21 : vector<1x16xf32>
    %23 = arith.addf %22, %3 : vector<1x16xf32>
    %c2_15 = arith.constant 2 : index
    %24 = memref.load %arg0[%c2_15] : memref<8xf32, #tpu.memory_space<smem>>
    %25 = vector.broadcast %24 : f32 to vector<1x16xf32>
    %26 = arith.mulf %25, %0 : vector<1x16xf32>
    %c2_16 = arith.constant 2 : index
    %27 = memref.load %arg1[%c2_16] : memref<8xf32, #tpu.memory_space<smem>>
    %28 = vector.broadcast %27 : f32 to vector<1x16xf32>
    %29 = arith.mulf %28, %1 : vector<1x16xf32>
    %30 = arith.addf %26, %29 : vector<1x16xf32>
    %31 = arith.addf %30, %3 : vector<1x16xf32>
    %c3 = arith.constant 3 : index
    %32 = memref.load %arg0[%c3] : memref<8xf32, #tpu.memory_space<smem>>
    %33 = vector.broadcast %32 : f32 to vector<1x16xf32>
    %34 = arith.mulf %33, %0 : vector<1x16xf32>
    %c3_17 = arith.constant 3 : index
    %35 = memref.load %arg1[%c3_17] : memref<8xf32, #tpu.memory_space<smem>>
    %36 = vector.broadcast %35 : f32 to vector<1x16xf32>
    %37 = arith.mulf %36, %1 : vector<1x16xf32>
    %38 = arith.addf %34, %37 : vector<1x16xf32>
    %39 = arith.addf %38, %3 : vector<1x16xf32>
    %c4 = arith.constant 4 : index
    %40 = memref.load %arg0[%c4] : memref<8xf32, #tpu.memory_space<smem>>
    %41 = vector.broadcast %40 : f32 to vector<1x16xf32>
    %42 = arith.mulf %41, %0 : vector<1x16xf32>
    %c4_18 = arith.constant 4 : index
    %43 = memref.load %arg1[%c4_18] : memref<8xf32, #tpu.memory_space<smem>>
    %44 = vector.broadcast %43 : f32 to vector<1x16xf32>
    %45 = arith.mulf %44, %1 : vector<1x16xf32>
    %46 = arith.addf %42, %45 : vector<1x16xf32>
    %47 = arith.addf %46, %3 : vector<1x16xf32>
    %c5 = arith.constant 5 : index
    %48 = memref.load %arg0[%c5] : memref<8xf32, #tpu.memory_space<smem>>
    %49 = vector.broadcast %48 : f32 to vector<1x16xf32>
    %50 = arith.mulf %49, %0 : vector<1x16xf32>
    %c5_19 = arith.constant 5 : index
    %51 = memref.load %arg1[%c5_19] : memref<8xf32, #tpu.memory_space<smem>>
    %52 = vector.broadcast %51 : f32 to vector<1x16xf32>
    %53 = arith.mulf %52, %1 : vector<1x16xf32>
    %54 = arith.addf %50, %53 : vector<1x16xf32>
    %55 = arith.addf %54, %3 : vector<1x16xf32>
    %c6 = arith.constant 6 : index
    %56 = memref.load %arg0[%c6] : memref<8xf32, #tpu.memory_space<smem>>
    %57 = vector.broadcast %56 : f32 to vector<1x16xf32>
    %58 = arith.mulf %57, %0 : vector<1x16xf32>
    %c6_20 = arith.constant 6 : index
    %59 = memref.load %arg1[%c6_20] : memref<8xf32, #tpu.memory_space<smem>>
    %60 = vector.broadcast %59 : f32 to vector<1x16xf32>
    %61 = arith.mulf %60, %1 : vector<1x16xf32>
    %62 = arith.addf %58, %61 : vector<1x16xf32>
    %63 = arith.addf %62, %3 : vector<1x16xf32>
    %c7 = arith.constant 7 : index
    %64 = memref.load %arg0[%c7] : memref<8xf32, #tpu.memory_space<smem>>
    %65 = vector.broadcast %64 : f32 to vector<1x16xf32>
    %66 = arith.mulf %65, %0 : vector<1x16xf32>
    %c7_21 = arith.constant 7 : index
    %67 = memref.load %arg1[%c7_21] : memref<8xf32, #tpu.memory_space<smem>>
    %68 = vector.broadcast %67 : f32 to vector<1x16xf32>
    %69 = arith.mulf %68, %1 : vector<1x16xf32>
    %70 = arith.addf %66, %69 : vector<1x16xf32>
    %71 = arith.addf %70, %3 : vector<1x16xf32>
    %72 = tpu.iota {dimensions = array<i32: 1>} : vector<1x8xi32>
    %cst = arith.constant 0.000000e+00 : f32
    %73 = vector.broadcast %cst : f32 to vector<1x8xf32>
    %cst_22 = arith.constant 0.000000e+00 : f32
    %74 = vector.broadcast %cst_22 : f32 to vector<1x1xf32>
    %75 = vector.broadcast %74 : vector<1x1xf32> to vector<1x16xf32>
    %76 = arith.mulf %75, %2 : vector<1x16xf32>
    %77 = arith.addf %76, %71 : vector<1x16xf32>
    %cst_23 = arith.constant 0.000000e+00 : f32
    %78 = vector.broadcast %cst_23 : f32 to vector<1x16xf32>
    %79 = arith.maximumf %77, %78 : vector<1x16xf32>
    %80 = arith.mulf %79, %5 : vector<1x16xf32>
    %cst_24 = arith.constant dense<0.000000e+00> : vector<1xf32>
    %81 = vector.multi_reduction <add>, %80, %cst_24 [1] : vector<1x16xf32> to vector<1xf32>
    %82 = vector.shape_cast %81 : vector<1xf32> to vector<1x1xf32>
    %83 = vector.broadcast %7 : f32 to vector<1x1xf32>
    %84 = arith.addf %82, %83 : vector<1x1xf32>
    %cst_25 = arith.constant 5.000000e-01 : f32
    %85 = vector.broadcast %cst_25 : f32 to vector<1x1xf32>
    %86 = arith.mulf %85, %84 : vector<1x1xf32>
    %87 = math.tanh %86 : vector<1x1xf32>
    %cst_26 = arith.constant 5.000000e-01 : f32
    %88 = vector.broadcast %cst_26 : f32 to vector<1x1xf32>
    %89 = arith.mulf %88, %87 : vector<1x1xf32>
    %cst_27 = arith.constant 5.000000e-01 : f32
    %90 = vector.broadcast %cst_27 : f32 to vector<1x1xf32>
    %91 = arith.addf %89, %90 : vector<1x1xf32>
    %92 = arith.mulf %79, %4 : vector<1x16xf32>
    %cst_28 = arith.constant dense<0.000000e+00> : vector<1xf32>
    %93 = vector.multi_reduction <add>, %92, %cst_28 [1] : vector<1x16xf32> to vector<1xf32>
    %94 = vector.shape_cast %93 : vector<1xf32> to vector<1x1xf32>
    %95 = vector.broadcast %6 : f32 to vector<1x1xf32>
    %96 = arith.addf %94, %95 : vector<1x1xf32>
    %c7_i32 = arith.constant 7 : i32
    %97 = vector.broadcast %c7_i32 : i32 to vector<1x8xi32>
    %98 = arith.cmpi eq, %72, %97 : vector<1x8xi32>
    %99 = vector.shape_cast %96 : vector<1x1xf32> to vector<1x1xf32>
    %100 = vector.broadcast %99 : vector<1x1xf32> to vector<1x8xf32>
    %101 = arith.select %98, %100, %73 : vector<1x8xi1>, vector<1x8xf32>
    %102 = vector.broadcast %91 : vector<1x1xf32> to vector<1x16xf32>
    %103 = arith.mulf %102, %2 : vector<1x16xf32>
    %104 = arith.addf %103, %63 : vector<1x16xf32>
    %cst_29 = arith.constant 0.000000e+00 : f32
    %105 = vector.broadcast %cst_29 : f32 to vector<1x16xf32>
    %106 = arith.maximumf %104, %105 : vector<1x16xf32>
    %107 = arith.mulf %106, %5 : vector<1x16xf32>
    %cst_30 = arith.constant dense<0.000000e+00> : vector<1xf32>
    %108 = vector.multi_reduction <add>, %107, %cst_30 [1] : vector<1x16xf32> to vector<1xf32>
    %109 = vector.shape_cast %108 : vector<1xf32> to vector<1x1xf32>
    %110 = vector.broadcast %7 : f32 to vector<1x1xf32>
    %111 = arith.addf %109, %110 : vector<1x1xf32>
    %cst_31 = arith.constant 5.000000e-01 : f32
    %112 = vector.broadcast %cst_31 : f32 to vector<1x1xf32>
    %113 = arith.mulf %112, %111 : vector<1x1xf32>
    %114 = math.tanh %113 : vector<1x1xf32>
    %cst_32 = arith.constant 5.000000e-01 : f32
    %115 = vector.broadcast %cst_32 : f32 to vector<1x1xf32>
    %116 = arith.mulf %115, %114 : vector<1x1xf32>
    %cst_33 = arith.constant 5.000000e-01 : f32
    %117 = vector.broadcast %cst_33 : f32 to vector<1x1xf32>
    %118 = arith.addf %116, %117 : vector<1x1xf32>
    %119 = arith.mulf %106, %4 : vector<1x16xf32>
    %cst_34 = arith.constant dense<0.000000e+00> : vector<1xf32>
    %120 = vector.multi_reduction <add>, %119, %cst_34 [1] : vector<1x16xf32> to vector<1xf32>
    %121 = vector.shape_cast %120 : vector<1xf32> to vector<1x1xf32>
    %122 = vector.broadcast %6 : f32 to vector<1x1xf32>
    %123 = arith.addf %121, %122 : vector<1x1xf32>
    %c6_i32 = arith.constant 6 : i32
    %124 = vector.broadcast %c6_i32 : i32 to vector<1x8xi32>
    %125 = arith.cmpi eq, %72, %124 : vector<1x8xi32>
    %126 = vector.shape_cast %123 : vector<1x1xf32> to vector<1x1xf32>
    %127 = vector.broadcast %126 : vector<1x1xf32> to vector<1x8xf32>
    %128 = arith.select %125, %127, %101 : vector<1x8xi1>, vector<1x8xf32>
    %129 = vector.broadcast %118 : vector<1x1xf32> to vector<1x16xf32>
    %130 = arith.mulf %129, %2 : vector<1x16xf32>
    %131 = arith.addf %130, %55 : vector<1x16xf32>
    %cst_35 = arith.constant 0.000000e+00 : f32
    %132 = vector.broadcast %cst_35 : f32 to vector<1x16xf32>
    %133 = arith.maximumf %131, %132 : vector<1x16xf32>
    %134 = arith.mulf %133, %5 : vector<1x16xf32>
    %cst_36 = arith.constant dense<0.000000e+00> : vector<1xf32>
    %135 = vector.multi_reduction <add>, %134, %cst_36 [1] : vector<1x16xf32> to vector<1xf32>
    %136 = vector.shape_cast %135 : vector<1xf32> to vector<1x1xf32>
    %137 = vector.broadcast %7 : f32 to vector<1x1xf32>
    %138 = arith.addf %136, %137 : vector<1x1xf32>
    %cst_37 = arith.constant 5.000000e-01 : f32
    %139 = vector.broadcast %cst_37 : f32 to vector<1x1xf32>
    %140 = arith.mulf %139, %138 : vector<1x1xf32>
    %141 = math.tanh %140 : vector<1x1xf32>
    %cst_38 = arith.constant 5.000000e-01 : f32
    %142 = vector.broadcast %cst_38 : f32 to vector<1x1xf32>
    %143 = arith.mulf %142, %141 : vector<1x1xf32>
    %cst_39 = arith.constant 5.000000e-01 : f32
    %144 = vector.broadcast %cst_39 : f32 to vector<1x1xf32>
    %145 = arith.addf %143, %144 : vector<1x1xf32>
    %146 = arith.mulf %133, %4 : vector<1x16xf32>
    %cst_40 = arith.constant dense<0.000000e+00> : vector<1xf32>
    %147 = vector.multi_reduction <add>, %146, %cst_40 [1] : vector<1x16xf32> to vector<1xf32>
    %148 = vector.shape_cast %147 : vector<1xf32> to vector<1x1xf32>
    %149 = vector.broadcast %6 : f32 to vector<1x1xf32>
    %150 = arith.addf %148, %149 : vector<1x1xf32>
    %c5_i32 = arith.constant 5 : i32
    %151 = vector.broadcast %c5_i32 : i32 to vector<1x8xi32>
    %152 = arith.cmpi eq, %72, %151 : vector<1x8xi32>
    %153 = vector.shape_cast %150 : vector<1x1xf32> to vector<1x1xf32>
    %154 = vector.broadcast %153 : vector<1x1xf32> to vector<1x8xf32>
    %155 = arith.select %152, %154, %128 : vector<1x8xi1>, vector<1x8xf32>
    %156 = vector.broadcast %145 : vector<1x1xf32> to vector<1x16xf32>
    %157 = arith.mulf %156, %2 : vector<1x16xf32>
    %158 = arith.addf %157, %47 : vector<1x16xf32>
    %cst_41 = arith.constant 0.000000e+00 : f32
    %159 = vector.broadcast %cst_41 : f32 to vector<1x16xf32>
    %160 = arith.maximumf %158, %159 : vector<1x16xf32>
    %161 = arith.mulf %160, %5 : vector<1x16xf32>
    %cst_42 = arith.constant dense<0.000000e+00> : vector<1xf32>
    %162 = vector.multi_reduction <add>, %161, %cst_42 [1] : vector<1x16xf32> to vector<1xf32>
    %163 = vector.shape_cast %162 : vector<1xf32> to vector<1x1xf32>
    %164 = vector.broadcast %7 : f32 to vector<1x1xf32>
    %165 = arith.addf %163, %164 : vector<1x1xf32>
    %cst_43 = arith.constant 5.000000e-01 : f32
    %166 = vector.broadcast %cst_43 : f32 to vector<1x1xf32>
    %167 = arith.mulf %166, %165 : vector<1x1xf32>
    %168 = math.tanh %167 : vector<1x1xf32>
    %cst_44 = arith.constant 5.000000e-01 : f32
    %169 = vector.broadcast %cst_44 : f32 to vector<1x1xf32>
    %170 = arith.mulf %169, %168 : vector<1x1xf32>
    %cst_45 = arith.constant 5.000000e-01 : f32
    %171 = vector.broadcast %cst_45 : f32 to vector<1x1xf32>
    %172 = arith.addf %170, %171 : vector<1x1xf32>
    %173 = arith.mulf %160, %4 : vector<1x16xf32>
    %cst_46 = arith.constant dense<0.000000e+00> : vector<1xf32>
    %174 = vector.multi_reduction <add>, %173, %cst_46 [1] : vector<1x16xf32> to vector<1xf32>
    %175 = vector.shape_cast %174 : vector<1xf32> to vector<1x1xf32>
    %176 = vector.broadcast %6 : f32 to vector<1x1xf32>
    %177 = arith.addf %175, %176 : vector<1x1xf32>
    %c4_i32 = arith.constant 4 : i32
    %178 = vector.broadcast %c4_i32 : i32 to vector<1x8xi32>
    %179 = arith.cmpi eq, %72, %178 : vector<1x8xi32>
    %180 = vector.shape_cast %177 : vector<1x1xf32> to vector<1x1xf32>
    %181 = vector.broadcast %180 : vector<1x1xf32> to vector<1x8xf32>
    %182 = arith.select %179, %181, %155 : vector<1x8xi1>, vector<1x8xf32>
    %183 = vector.broadcast %172 : vector<1x1xf32> to vector<1x16xf32>
    %184 = arith.mulf %183, %2 : vector<1x16xf32>
    %185 = arith.addf %184, %39 : vector<1x16xf32>
    %cst_47 = arith.constant 0.000000e+00 : f32
    %186 = vector.broadcast %cst_47 : f32 to vector<1x16xf32>
    %187 = arith.maximumf %185, %186 : vector<1x16xf32>
    %188 = arith.mulf %187, %5 : vector<1x16xf32>
    %cst_48 = arith.constant dense<0.000000e+00> : vector<1xf32>
    %189 = vector.multi_reduction <add>, %188, %cst_48 [1] : vector<1x16xf32> to vector<1xf32>
    %190 = vector.shape_cast %189 : vector<1xf32> to vector<1x1xf32>
    %191 = vector.broadcast %7 : f32 to vector<1x1xf32>
    %192 = arith.addf %190, %191 : vector<1x1xf32>
    %cst_49 = arith.constant 5.000000e-01 : f32
    %193 = vector.broadcast %cst_49 : f32 to vector<1x1xf32>
    %194 = arith.mulf %193, %192 : vector<1x1xf32>
    %195 = math.tanh %194 : vector<1x1xf32>
    %cst_50 = arith.constant 5.000000e-01 : f32
    %196 = vector.broadcast %cst_50 : f32 to vector<1x1xf32>
    %197 = arith.mulf %196, %195 : vector<1x1xf32>
    %cst_51 = arith.constant 5.000000e-01 : f32
    %198 = vector.broadcast %cst_51 : f32 to vector<1x1xf32>
    %199 = arith.addf %197, %198 : vector<1x1xf32>
    %200 = arith.mulf %187, %4 : vector<1x16xf32>
    %cst_52 = arith.constant dense<0.000000e+00> : vector<1xf32>
    %201 = vector.multi_reduction <add>, %200, %cst_52 [1] : vector<1x16xf32> to vector<1xf32>
    %202 = vector.shape_cast %201 : vector<1xf32> to vector<1x1xf32>
    %203 = vector.broadcast %6 : f32 to vector<1x1xf32>
    %204 = arith.addf %202, %203 : vector<1x1xf32>
    %c3_i32 = arith.constant 3 : i32
    %205 = vector.broadcast %c3_i32 : i32 to vector<1x8xi32>
    %206 = arith.cmpi eq, %72, %205 : vector<1x8xi32>
    %207 = vector.shape_cast %204 : vector<1x1xf32> to vector<1x1xf32>
    %208 = vector.broadcast %207 : vector<1x1xf32> to vector<1x8xf32>
    %209 = arith.select %206, %208, %182 : vector<1x8xi1>, vector<1x8xf32>
    %210 = vector.broadcast %199 : vector<1x1xf32> to vector<1x16xf32>
    %211 = arith.mulf %210, %2 : vector<1x16xf32>
    %212 = arith.addf %211, %31 : vector<1x16xf32>
    %cst_53 = arith.constant 0.000000e+00 : f32
    %213 = vector.broadcast %cst_53 : f32 to vector<1x16xf32>
    %214 = arith.maximumf %212, %213 : vector<1x16xf32>
    %215 = arith.mulf %214, %5 : vector<1x16xf32>
    %cst_54 = arith.constant dense<0.000000e+00> : vector<1xf32>
    %216 = vector.multi_reduction <add>, %215, %cst_54 [1] : vector<1x16xf32> to vector<1xf32>
    %217 = vector.shape_cast %216 : vector<1xf32> to vector<1x1xf32>
    %218 = vector.broadcast %7 : f32 to vector<1x1xf32>
    %219 = arith.addf %217, %218 : vector<1x1xf32>
    %cst_55 = arith.constant 5.000000e-01 : f32
    %220 = vector.broadcast %cst_55 : f32 to vector<1x1xf32>
    %221 = arith.mulf %220, %219 : vector<1x1xf32>
    %222 = math.tanh %221 : vector<1x1xf32>
    %cst_56 = arith.constant 5.000000e-01 : f32
    %223 = vector.broadcast %cst_56 : f32 to vector<1x1xf32>
    %224 = arith.mulf %223, %222 : vector<1x1xf32>
    %cst_57 = arith.constant 5.000000e-01 : f32
    %225 = vector.broadcast %cst_57 : f32 to vector<1x1xf32>
    %226 = arith.addf %224, %225 : vector<1x1xf32>
    %227 = arith.mulf %214, %4 : vector<1x16xf32>
    %cst_58 = arith.constant dense<0.000000e+00> : vector<1xf32>
    %228 = vector.multi_reduction <add>, %227, %cst_58 [1] : vector<1x16xf32> to vector<1xf32>
    %229 = vector.shape_cast %228 : vector<1xf32> to vector<1x1xf32>
    %230 = vector.broadcast %6 : f32 to vector<1x1xf32>
    %231 = arith.addf %229, %230 : vector<1x1xf32>
    %c2_i32 = arith.constant 2 : i32
    %232 = vector.broadcast %c2_i32 : i32 to vector<1x8xi32>
    %233 = arith.cmpi eq, %72, %232 : vector<1x8xi32>
    %234 = vector.shape_cast %231 : vector<1x1xf32> to vector<1x1xf32>
    %235 = vector.broadcast %234 : vector<1x1xf32> to vector<1x8xf32>
    %236 = arith.select %233, %235, %209 : vector<1x8xi1>, vector<1x8xf32>
    %237 = vector.broadcast %226 : vector<1x1xf32> to vector<1x16xf32>
    %238 = arith.mulf %237, %2 : vector<1x16xf32>
    %239 = arith.addf %238, %23 : vector<1x16xf32>
    %cst_59 = arith.constant 0.000000e+00 : f32
    %240 = vector.broadcast %cst_59 : f32 to vector<1x16xf32>
    %241 = arith.maximumf %239, %240 : vector<1x16xf32>
    %242 = arith.mulf %241, %5 : vector<1x16xf32>
    %cst_60 = arith.constant dense<0.000000e+00> : vector<1xf32>
    %243 = vector.multi_reduction <add>, %242, %cst_60 [1] : vector<1x16xf32> to vector<1xf32>
    %244 = vector.shape_cast %243 : vector<1xf32> to vector<1x1xf32>
    %245 = vector.broadcast %7 : f32 to vector<1x1xf32>
    %246 = arith.addf %244, %245 : vector<1x1xf32>
    %cst_61 = arith.constant 5.000000e-01 : f32
    %247 = vector.broadcast %cst_61 : f32 to vector<1x1xf32>
    %248 = arith.mulf %247, %246 : vector<1x1xf32>
    %249 = math.tanh %248 : vector<1x1xf32>
    %cst_62 = arith.constant 5.000000e-01 : f32
    %250 = vector.broadcast %cst_62 : f32 to vector<1x1xf32>
    %251 = arith.mulf %250, %249 : vector<1x1xf32>
    %cst_63 = arith.constant 5.000000e-01 : f32
    %252 = vector.broadcast %cst_63 : f32 to vector<1x1xf32>
    %253 = arith.addf %251, %252 : vector<1x1xf32>
    %254 = arith.mulf %241, %4 : vector<1x16xf32>
    %cst_64 = arith.constant dense<0.000000e+00> : vector<1xf32>
    %255 = vector.multi_reduction <add>, %254, %cst_64 [1] : vector<1x16xf32> to vector<1xf32>
    %256 = vector.shape_cast %255 : vector<1xf32> to vector<1x1xf32>
    %257 = vector.broadcast %6 : f32 to vector<1x1xf32>
    %258 = arith.addf %256, %257 : vector<1x1xf32>
    %c1_i32 = arith.constant 1 : i32
    %259 = vector.broadcast %c1_i32 : i32 to vector<1x8xi32>
    %260 = arith.cmpi eq, %72, %259 : vector<1x8xi32>
    %261 = vector.shape_cast %258 : vector<1x1xf32> to vector<1x1xf32>
    %262 = vector.broadcast %261 : vector<1x1xf32> to vector<1x8xf32>
    %263 = arith.select %260, %262, %236 : vector<1x8xi1>, vector<1x8xf32>
    %264 = vector.broadcast %253 : vector<1x1xf32> to vector<1x16xf32>
    %265 = arith.mulf %264, %2 : vector<1x16xf32>
    %266 = arith.addf %265, %15 : vector<1x16xf32>
    %cst_65 = arith.constant 0.000000e+00 : f32
    %267 = vector.broadcast %cst_65 : f32 to vector<1x16xf32>
    %268 = arith.maximumf %266, %267 : vector<1x16xf32>
    %269 = arith.mulf %268, %4 : vector<1x16xf32>
    %cst_66 = arith.constant dense<0.000000e+00> : vector<1xf32>
    %270 = vector.multi_reduction <add>, %269, %cst_66 [1] : vector<1x16xf32> to vector<1xf32>
    %271 = vector.shape_cast %270 : vector<1xf32> to vector<1x1xf32>
    %272 = vector.broadcast %6 : f32 to vector<1x1xf32>
    %273 = arith.addf %271, %272 : vector<1x1xf32>
    %c0_i32 = arith.constant 0 : i32
    %274 = vector.broadcast %c0_i32 : i32 to vector<1x8xi32>
    %275 = arith.cmpi eq, %72, %274 : vector<1x8xi32>
    %276 = vector.shape_cast %273 : vector<1x1xf32> to vector<1x1xf32>
    %277 = vector.broadcast %276 : vector<1x1xf32> to vector<1x8xf32>
    %278 = arith.select %275, %277, %263 : vector<1x8xi1>, vector<1x8xf32>
    %cst_67 = arith.constant 5.000000e-01 : f32
    %279 = vector.broadcast %cst_67 : f32 to vector<1x8xf32>
    %280 = arith.mulf %279, %278 : vector<1x8xf32>
    %281 = math.tanh %280 : vector<1x8xf32>
    %cst_68 = arith.constant 5.000000e-01 : f32
    %282 = vector.broadcast %cst_68 : f32 to vector<1x8xf32>
    %283 = arith.mulf %282, %281 : vector<1x8xf32>
    %cst_69 = arith.constant 5.000000e-01 : f32
    %284 = vector.broadcast %cst_69 : f32 to vector<1x8xf32>
    %285 = arith.addf %283, %284 : vector<1x8xf32>
    %c0_70 = arith.constant 0 : index
    %c0_71 = arith.constant 0 : index
    %286 = vector.load %arg6[%c0_70, %c0_71] : memref<1x8xf32, #tpu.memory_space<vmem>>, vector<1x8xf32>
    tpu.vector_store %arg6[%c0_70, %c0_71], %285 {strides = array<i32>} : memref<1x8xf32, #tpu.memory_space<vmem>>, vector<1x8xf32>,
    return
  }
}

</mosaic_0001>

<llo_original>
// kernel: tpu_custom_call.1
$region0: #{tpu_custom_call.1}
  #allocation0 [shape = 'u32[]', space=smem, size = 0x4, offset = 0x4, fixed_abs, tag = 'smem constant byte address 0x4 - core index']
  #allocation1 [shape = 'u32[144,128]{1,0:T(1,128)}', space=vmem, size = 0x12000, scoped, tag = 'internal scratch']
  %s0 = inlined_call_operand.hbm [shape: f32[8], index: 0, kind: input, shape index: {}]
  %s1 = inlined_call_operand.vmem [shape: f32[8], index: 1, kind: input, shape index: {}]
  %s2 = inlined_call_operand.vmem [shape: f32[3,16], index: 2, kind: input, shape index: {}]
  %s3 = inlined_call_operand.vmem [shape: f32[1,16], index: 3, kind: input, shape index: {}]
  %s4 = inlined_call_operand.vmem [shape: f32[2,16], index: 4, kind: input, shape index: {}]
  %s5 = inlined_call_operand.vmem [shape: f32[2], index: 5, kind: input, shape index: {}]
  %s6 = inlined_call_operand.hbm [shape: f32[1,8], index: 6, kind: output, shape index: {}]
  %s7 = sld [smem:[#allocation0]]
  $region46: #{tpu_custom_call.1} parent=0
    _
  %s9 = ssub.s32 1, %s7
  %s10 = scalar_select 0, %s9, %s7
  $region1: #{tpu_custom_call.1} parent=0
    #allocation2 [shape = 'u8[512]{0}', space=smem, size = 0x200, scoped, tag = 'input window, operand 0, single buffered']
    #allocation3 [shape = 's32[1]{0}', space=sflag, size = 0x4, scoped, tag = 'scoped memory for tpu_custom_call.1']
    #allocation4 [shape = 's32[1]{0}', space=sflag, size = 0x4, scoped, tag = 'scoped memory for tpu_custom_call.1']
    #allocation5 [shape = 's32[1]{0}', space=sflag, size = 0x4, scoped, tag = 'scoped memory for tpu_custom_call.1']
    #allocation6 [shape = 'u8[512]{0}', space=smem, size = 0x200, scoped, tag = 'input window, operand 1, single buffered']
    #allocation7 [shape = 'u8[512]{0}', space=smem, size = 0x200, scoped, tag = 'input window, operand 5, single buffered']
    #allocation8 [shape = 's32[1]{0}', space=sflag, size = 0x4, scoped, tag = 'scoped memory for tpu_custom_call.1']
    #allocation9 [shape = 'u8[512]{0}', space=vmem, size = 0x400, scoped, tag = 'output window, operand 0, single buffered']
    %11 = vsyncpa [#allocation4], 0
    %12 = vsyncpa [#allocation5], 0
    %13 = vsyncpa [#allocation8], 0
    %14 = vsyncpa [#allocation3], 0
    // Predicated region
    $region2: #{tpu_custom_call.1} parent=1 // pred_check
      _
    $region3: #{tpu_custom_call.1} parent=1 // pred_check_branch
      %16 = sbr.rel (0) target = $region5
    $region4: #{tpu_custom_call.1} parent=1 // pred_region
      %s18 = ssub.s32 16, 16
      %19 = vsyncadd [#allocation4], %s18
      %22 = dma.hbm_to_smem %s0, 16, [#allocation2], [#allocation4]
    $region5: #{tpu_custom_call.1} parent=1 // pred_fallthru
      _
    // Predicated region
    $region6: #{tpu_custom_call.1} parent=1 // pred_check
      _
    $region7: #{tpu_custom_call.1} parent=1 // pred_check_branch
      %24 = sbr.rel (0) target = $region9
    $region8: #{tpu_custom_call.1} parent=1 // pred_region
      %s26 = ssub.s32 16, 16
      %27 = vsyncadd [#allocation5], %s26
      %s29 = sshll.u32 %s1, 4
      %s30 = int_to_ptr.vmem [resolvable:$true] %s29
      %32 = dma.vmem_to_smem %s30, 16, [#allocation6], [#allocation5]
    $region9: #{tpu_custom_call.1} parent=1 // pred_fallthru
      _
    // Predicated region
    $region10: #{tpu_custom_call.1} parent=1 // pred_check
      _
    $region11: #{tpu_custom_call.1} parent=1 // pred_check_branch
      %34 = sbr.rel (0) target = $region13
    $region12: #{tpu_custom_call.1} parent=1 // pred_region
      _
    $region13: #{tpu_custom_call.1} parent=1 // pred_fallthru
      _
    // Predicated region
    $region14: #{tpu_custom_call.1} parent=1 // pred_check
      _
    $region15: #{tpu_custom_call.1} parent=1 // pred_check_branch
      %36 = sbr.rel (0) target = $region17
    $region16: #{tpu_custom_call.1} parent=1 // pred_region
      _
    $region17: #{tpu_custom_call.1} parent=1 // pred_fallthru
      _
    // Predicated region
    $region18: #{tpu_custom_call.1} parent=1 // pred_check
      _
    $region19: #{tpu_custom_call.1} parent=1 // pred_check_branch
      %38 = sbr.rel (0) target = $region21
    $region20: #{tpu_custom_call.1} parent=1 // pred_region
      _
    $region21: #{tpu_custom_call.1} parent=1 // pred_fallthru
      _
    // Predicated region
    $region22: #{tpu_custom_call.1} parent=1 // pred_check
      _
    $region23: #{tpu_custom_call.1} parent=1 // pred_check_branch
      %40 = sbr.rel (0) target = $region25
    $region24: #{tpu_custom_call.1} parent=1 // pred_region
      %s42 = ssub.s32 16, 16
      %43 = vsyncadd [#allocation8], %s42
      %s45 = sshll.u32 %s5, 4
      %s46 = int_to_ptr.vmem [resolvable:$true] %s45
      %48 = dma.vmem_to_smem %s46, 16, [#allocation7], [#allocation8]
    $region25: #{tpu_custom_call.1} parent=1 // pred_fallthru
      _
    // Predicated region
    $region26: #{tpu_custom_call.1} parent=1 // pred_check
      _
    $region27: #{tpu_custom_call.1} parent=1 // pred_check_branch
      %50 = sbr.rel (0) target = $region29
    $region28: #{tpu_custom_call.1} parent=1 // pred_region
      %51 = dma.done [#allocation4], 16
    $region29: #{tpu_custom_call.1} parent=1 // pred_fallthru
      _
    // Predicated region
    $region30: #{tpu_custom_call.1} parent=1 // pred_check
      _
    $region31: #{tpu_custom_call.1} parent=1 // pred_check_branch
      %53 = sbr.rel (0) target = $region33
    $region32: #{tpu_custom_call.1} parent=1 // pred_region
      %54 = dma.done [#allocation5], 16
    $region33: #{tpu_custom_call.1} parent=1 // pred_fallthru
      _
    // Predicated region
    $region34: #{tpu_custom_call.1} parent=1 // pred_check
      _
    $region35: #{tpu_custom_call.1} parent=1 // pred_check_branch
      %56 = sbr.rel (0) target = $region37
    $region36: #{tpu_custom_call.1} parent=1 // pred_region
      %57 = dma.done [#allocation8], 16
    $region37: #{tpu_custom_call.1} parent=1 // pred_fallthru
      _
    %58 = sfence
    %v59 = vld [vmem:[%s2] sm:$0x1]
    %v60 = vld [vmem:[%s2 + $0x1] sm:$0x1]
    %v61 = vld [vmem:[%s2 + $0x2] sm:$0x1]
    %v62 = vld [vmem:[%s3] sm:$0x1]
    %v63 = vld [vmem:[%s4] sm:$0x1]
    %v64 = vld [vmem:[%s4 + $0x1] sm:$0x1]
    %s65 = sld [smem:[#allocation7]]
    %s66 = sld [smem:[#allocation7 + $0x1]]
    %s67 = sld [smem:[#allocation2]]
    %v68 = vstv %s67
    %v69 = vmul.f32 %v68, %v59
    %s70 = sld [smem:[#allocation6]]
    %v71 = vstv %s70
    %v72 = vmul.f32 %v71, %v60
    %v73 = vadd.f32 %v69, %v72
    %v74 = vadd.f32 %v73, %v62
    %s75 = sld [smem:[#allocation2 + $0x1]]
    %v76 = vstv %s75
    %v77 = vmul.f32 %v76, %v59
    %s78 = sld [smem:[#allocation6 + $0x1]]
    %v79 = vstv %s78
    %v80 = vmul.f32 %v79, %v60
    %v81 = vadd.f32 %v77, %v80
    %v82 = vadd.f32 %v81, %v62
    %s83 = sld [smem:[#allocation2 + $0x2]]
    %v84 = vstv %s83
    %v85 = vmul.f32 %v84, %v59
    %s86 = sld [smem:[#allocation6 + $0x2]]
    %v87 = vstv %s86
    %v88 = vmul.f32 %v87, %v60
    %v89 = vadd.f32 %v85, %v88
    %v90 = vadd.f32 %v89, %v62
    %s91 = sld [smem:[#allocation2 + $0x3]]
    %v92 = vstv %s91
    %v93 = vmul.f32 %v92, %v59
    %s94 = sld [smem:[#allocation6 + $0x3]]
    %v95 = vstv %s94
    %v96 = vmul.f32 %v95, %v60
    %v97 = vadd.f32 %v93, %v96
    %v98 = vadd.f32 %v97, %v62
    %s99 = sld [smem:[#allocation2 + $0x4]]
    %v100 = vstv %s99
    %v101 = vmul.f32 %v100, %v59
    %s102 = sld [smem:[#allocation6 + $0x4]]
    %v103 = vstv %s102
    %v104 = vmul.f32 %v103, %v60
    %v105 = vadd.f32 %v101, %v104
    %v106 = vadd.f32 %v105, %v62
    %s107 = sld [smem:[#allocation2 + $0x5]]
    %v108 = vstv %s107
    %v109 = vmul.f32 %v108, %v59
    %s110 = sld [smem:[#allocation6 + $0x5]]
    %v111 = vstv %s110
    %v112 = vmul.f32 %v111, %v60
    %v113 = vadd.f32 %v109, %v112
    %v114 = vadd.f32 %v113, %v62
    %s115 = sld [smem:[#allocation2 + $0x6]]
    %v116 = vstv %s115
    %v117 = vmul.f32 %v116, %v59
    %s118 = sld [smem:[#allocation6 + $0x6]]
    %v119 = vstv %s118
    %v120 = vmul.f32 %v119, %v60
    %v121 = vadd.f32 %v117, %v120
    %v122 = vadd.f32 %v121, %v62
    %s123 = sld [smem:[#allocation2 + $0x7]]
    %v124 = vstv %s123
    %v125 = vmul.f32 %v124, %v59
    %s126 = sld [smem:[#allocation6 + $0x7]]
    %v127 = vstv %s126
    %v128 = vmul.f32 %v127, %v60
    %v129 = vadd.f32 %v125, %v128
    %v130 = vadd.f32 %v129, %v62
    %v131 = vlaneseq
    %v132 = vand.u32 %v131, 127
    %v133 = vmul.f32 %v61, 0.0
    %v134 = vadd.f32 %v133, %v130
    %v135 = vmax.f32 %v134, 0.0
    %v136 = vmul.f32 %v135, %v64
    %vm137 = vcmask 122880
    %v138 = vsel %vm137, %v136, 0.0
    %139 = vadd.xlane.f32.xlu0 %v138
    %v140 = vpop.xlane.xlu0 %139
    %v141 = vstv %s66
    %v142 = vadd.f32 %v140, %v141
    %v143 = vmul.f32 %v142, 0.5
    %v144 = vtanh.pop %v143
    %v145 = vmul.f32 %v144, 0.5
    %v146 = vadd.f32 %v145, 0.5
    %v147 = vmul.f32 %v135, %v63
    %v148 = vsel %vm137, %v147, 0.0
    %149 = vadd.xlane.f32.xlu0 %v148
    %v150 = vpop.xlane.xlu0 %149
    %v151 = vstv %s65
    %v152 = vadd.f32 %v150, %v151
    %vm153 = vcmp.eq.s32.totalorder %v132, 7
    %v154 = vsel %vm153, %v152, 0.0
    %v155 = vmul.f32 %v146, %v61
    %v156 = vadd.f32 %v155, %v122
    %v157 = vmax.f32 %v156, 0.0
    %v158 = vmul.f32 %v157, %v64
    %v159 = vsel %vm137, %v158, 0.0
    %160 = vadd.xlane.f32.xlu0 %v159
    %v161 = vpop.xlane.xlu0 %160
    %v162 = vadd.f32 %v161, %v141
    %v163 = vmul.f32 %v162, 0.5
    %v164 = vtanh.pop %v163
    %v165 = vmul.f32 %v164, 0.5
    %v166 = vadd.f32 %v165, 0.5
    %v167 = vmul.f32 %v157, %v63
    %v168 = vsel %vm137, %v167, 0.0
    %169 = vadd.xlane.f32.xlu0 %v168
    %v170 = vpop.xlane.xlu0 %169
    %v171 = vadd.f32 %v170, %v151
    %vm172 = vcmp.eq.s32.totalorder %v132, 6
    %v173 = vsel %vm172, %v171, %v154
    %v174 = vmul.f32 %v166, %v61
    %v175 = vadd.f32 %v174, %v114
    %v176 = vmax.f32 %v175, 0.0
    %v177 = vmul.f32 %v176, %v64
    %v178 = vsel %vm137, %v177, 0.0
    %179 = vadd.xlane.f32.xlu0 %v178
    %v180 = vpop.xlane.xlu0 %179
    %v181 = vadd.f32 %v180, %v141
    %v182 = vmul.f32 %v181, 0.5
    %v183 = vtanh.pop %v182
    %v184 = vmul.f32 %v183, 0.5
    %v185 = vadd.f32 %v184, 0.5
    %v186 = vmul.f32 %v176, %v63
    %v187 = vsel %vm137, %v186, 0.0
    %188 = vadd.xlane.f32.xlu0 %v187
    %v189 = vpop.xlane.xlu0 %188
    %v190 = vadd.f32 %v189, %v151
    %vm191 = vcmp.eq.s32.totalorder %v132, 5
    %v192 = vsel %vm191, %v190, %v173
    %v193 = vmul.f32 %v185, %v61
    %v194 = vadd.f32 %v193, %v106
    %v195 = vmax.f32 %v194, 0.0
    %v196 = vmul.f32 %v195, %v64
    %v197 = vsel %vm137, %v196, 0.0
    %198 = vadd.xlane.f32.xlu0 %v197
    %v199 = vpop.xlane.xlu0 %198
    %v200 = vadd.f32 %v199, %v141
    %v201 = vmul.f32 %v200, 0.5
    %v202 = vtanh.pop %v201
    %v203 = vmul.f32 %v202, 0.5
    %v204 = vadd.f32 %v203, 0.5
    %v205 = vmul.f32 %v195, %v63
    %v206 = vsel %vm137, %v205, 0.0
    %207 = vadd.xlane.f32.xlu0 %v206
    %v208 = vpop.xlane.xlu0 %207
    %v209 = vadd.f32 %v208, %v151
    %vm210 = vcmp.eq.s32.totalorder %v132, 4
    %v211 = vsel %vm210, %v209, %v192
    %v212 = vmul.f32 %v204, %v61
    %v213 = vadd.f32 %v212, %v98
    %v214 = vmax.f32 %v213, 0.0
    %v215 = vmul.f32 %v214, %v64
    %v216 = vsel %vm137, %v215, 0.0
    %217 = vadd.xlane.f32.xlu0 %v216
    %v218 = vpop.xlane.xlu0 %217
    %v219 = vadd.f32 %v218, %v141
    %v220 = vmul.f32 %v219, 0.5
    %v221 = vtanh.pop %v220
    %v222 = vmul.f32 %v221, 0.5
    %v223 = vadd.f32 %v222, 0.5
    %v224 = vmul.f32 %v214, %v63
    %v225 = vsel %vm137, %v224, 0.0
    %226 = vadd.xlane.f32.xlu0 %v225
    %v227 = vpop.xlane.xlu0 %226
    %v228 = vadd.f32 %v227, %v151
    %vm229 = vcmp.eq.s32.totalorder %v132, 3
    %v230 = vsel %vm229, %v228, %v211
    %v231 = vmul.f32 %v223, %v61
    %v232 = vadd.f32 %v231, %v90
    %v233 = vmax.f32 %v232, 0.0
    %v234 = vmul.f32 %v233, %v64
    %v235 = vsel %vm137, %v234, 0.0
    %236 = vadd.xlane.f32.xlu0 %v235
    %v237 = vpop.xlane.xlu0 %236
    %v238 = vadd.f32 %v237, %v141
    %v239 = vmul.f32 %v238, 0.5
    %v240 = vtanh.pop %v239
    %v241 = vmul.f32 %v240, 0.5
    %v242 = vadd.f32 %v241, 0.5
    %v243 = vmul.f32 %v233, %v63
    %v244 = vsel %vm137, %v243, 0.0
    %245 = vadd.xlane.f32.xlu0 %v244
    %v246 = vpop.xlane.xlu0 %245
    %v247 = vadd.f32 %v246, %v151
    %vm248 = vcmp.eq.s32.totalorder %v132, 2
    %v249 = vsel %vm248, %v247, %v230
    %v250 = vmul.f32 %v242, %v61
    %v251 = vadd.f32 %v250, %v82
    %v252 = vmax.f32 %v251, 0.0
    %v253 = vmul.f32 %v252, %v64
    %v254 = vsel %vm137, %v253, 0.0
    %255 = vadd.xlane.f32.xlu0 %v254
    %v256 = vpop.xlane.xlu0 %255
    %v257 = vadd.f32 %v256, %v141
    %v258 = vmul.f32 %v257, 0.5
    %v259 = vtanh.pop %v258
    %v260 = vmul.f32 %v259, 0.5
    %v261 = vadd.f32 %v260, 0.5
    %v262 = vmul.f32 %v252, %v63
    %v263 = vsel %vm137, %v262, 0.0
    %264 = vadd.xlane.f32.xlu0 %v263
    %v265 = vpop.xlane.xlu0 %264
    %v266 = vadd.f32 %v265, %v151
    %vm267 = vcmp.eq.s32.totalorder %v132, 1
    %v268 = vsel %vm267, %v266, %v249
    %v269 = vmul.f32 %v261, %v61
    %v270 = vadd.f32 %v269, %v74
    %v271 = vmax.f32 %v270, 0.0
    %v272 = vmul.f32 %v271, %v63
    %v273 = vsel %vm137, %v272, 0.0
    %274 = vadd.xlane.f32.xlu0 %v273
    %v275 = vpop.xlane.xlu0 %274
    %v276 = vadd.f32 %v275, %v151
    %vm277 = vcmp.eq.s32.totalorder %v132, 0
    %v278 = vsel %vm277, %v276, %v268
    %v279 = vmul.f32 %v278, 0.5
    %v280 = vtanh.pop %v279
    %v281 = vmul.f32 %v280, 0.5
    %v282 = vadd.f32 %v281, 0.5
    %vm283 = vcmask 57344
    %284 = vst.msk [vmem:[#allocation9] sm:$0x1] %vm283, %v282
    // Predicated region
    $region38: #{tpu_custom_call.1} parent=1 // pred_check
      _
    $region39: #{tpu_custom_call.1} parent=1 // pred_check_branch
      %286 = sbr.rel (0) target = $region41
    $region40: #{tpu_custom_call.1} parent=1 // pred_region
      %s288 = ssub.s32 16, 16
      %289 = vsyncadd [#allocation3], %s288
      %s291 = sshll.u32 [#allocation9], 4
      %s292 = int_to_ptr.vmem [resolvable:$true] %s291
      %294 = dma.vmem_to_hbm [thread:$0]  %s292, 16, %s6, [#allocation3]
    $region41: #{tpu_custom_call.1} parent=1 // pred_fallthru
      _
    // Predicated region
    $region42: #{tpu_custom_call.1} parent=1 // pred_check
      _
    $region43: #{tpu_custom_call.1} parent=1 // pred_check_branch
      %296 = sbr.rel (0) target = $region45
    $region44: #{tpu_custom_call.1} parent=1 // pred_region
      %297 = dma.done [#allocation3], 16
    $region45: #{tpu_custom_call.1} parent=1 // pred_fallthru
      _
    %298 = vsyncpa [#allocation3], 1
    %299 = vsyncpa [#allocation4], 1
    %300 = vsyncpa [#allocation5], 1
    %301 = vsyncpa [#allocation8], 1

</llo_original>
